<compile_context>
chip_gen: v5e
topology: v5e:2x2
jax: 0.10.0
libtpu: 0.0.40
codegen_flags: <defaults>
</compile_context>

<pallas_src>
import jax
import jax.numpy as jnp
from jax.experimental import pallas as pl
from jax.experimental.pallas import tpu as pltpu


# ----------------------------------------------------------------------------
# Single fused kernel, single invocation (no grid).  Everything (masked RGB
# pooling, point-wise MLP + max, fusion linear) happens on VMEM-resident data;
# one [B, Cout] store at the end.
# ----------------------------------------------------------------------------
def _fused_kernel(rgb_ref, mask_ref, pc_ref, pack1_ref, pack2_ref, out_ref):
    B = rgb_ref.shape[0]
    C = pack1_ref.shape[0]
    COUT = out_ref.shape[1]

    # Packed parameters, loaded once (static ref slices are free).
    w_rgb_t = pack1_ref[:, 0:3]               # [C, 3]
    b_rgb = pack1_ref[:, 3:4]                 # [C, 1]
    w_pc_t = pack1_ref[:, 4:7]                # [C, 3]
    b_pc = pack1_ref[:, 7:8]                  # [C, 1]
    w_f_rgb = pack2_ref[0:C, 0:COUT]          # [C, COUT]
    w_f_pc = pack2_ref[0:C, COUT:2 * COUT]    # [C, COUT]
    b_fuse = pack2_ref[C:C + 1, 0:COUT]       # [1, COUT]

    rows = []
    for b in range(B):          # B is tiny and static -> unrolled at trace time
        x = rgb_ref[b]          # [3, HW]   (HW on the lane axis)
        m = mask_ref[b]         # [1, HW]
        p = pc_ref[b]           # [3, N]    (N on the lane axis)

        # --- RGB path: ONE merged lane reduce for [Σm·x0, Σm·x1, Σm·x2, Σm].
        stacked = jnp.concatenate([x * m, m], axis=0)          # [4, HW]
        sums = jnp.sum(stacked, axis=1, keepdims=True)         # [4, 1]
        msum = sums[3:4, :]                                     # [1, 1]
        inv = 1.0 / jnp.maximum(msum, 1e-6)                     # exact divide
        # Exact fold of sum((xW+b)*m)/max(Σm,eps): bias scaled by Σm·inv so the
        # all-zero-mask edge case matches the reference too.
        rgb_col = (w_rgb_t[:, 0:1] * sums[0:1, :]
                   + w_rgb_t[:, 1:2] * sums[1:2, :]
                   + w_rgb_t[:, 2:3] * sums[2:3, :]) * inv \
            + b_rgb * (msum * inv)                              # [C, 1]

        # --- PC path: 3 broadcast VPU FMAs -> [C, N], then lane-axis max.
        feat = (w_pc_t[:, 0:1] * p[0:1, :]
                + w_pc_t[:, 1:2] * p[1:2, :]
                + w_pc_t[:, 2:3] * p[2:3, :]) + b_pc            # [C, N]
        pc_col = jnp.max(feat, axis=1, keepdims=True)           # [C, 1]

        # --- Fusion Linear(2C -> Cout): split-weight broadcast + sublane reduce
        #     (no concat, no MXU — correct shape for B=2).
        rows.append(jnp.sum(rgb_col * w_f_rgb + pc_col * w_f_pc,
                            axis=0, keepdims=True) + b_fuse)    # [1, COUT]

    # Single lane/sublane-dense output store for the whole batch.
    out_ref[...] = jnp.concatenate(rows, axis=0).astype(out_ref.dtype)


def fused_forward(params, rgb_chw, mask_flat, pc_t):
    """rgb_chw: [B,3,HW], mask_flat: [B,1,HW], pc_t: [B,3,N]  ->  [B, Cout]."""
    B = rgb_chw.shape[0]
    C = params["w_rgb"].shape[1]
    COUT = params["w_fuse"].shape[1]

    # Parameter packing (tiny, done once outside the kernel):
    #   pack1: [C, 8]        = [w_rgb^T | b_rgb | w_pc^T | b_pc]
    #   pack2: [C+1, 2*COUT] = rows 0..C-1: [w_fuse_rgb | w_fuse_pc]
    #                          row  C     : [b_fuse     | 0       ]
    pack1 = jnp.concatenate(
        [params["w_rgb"].T,
         params["b_rgb"].reshape(C, 1),
         params["w_pc"].T,
         params["b_pc"].reshape(C, 1)], axis=1).astype(jnp.float32)
    pack2 = jnp.concatenate(
        [jnp.concatenate([params["w_fuse"][:C], params["w_fuse"][C:]], axis=1),
         jnp.concatenate([params["b_fuse"].reshape(1, COUT),
                          jnp.zeros((1, COUT), jnp.float32)], axis=1)],
        axis=0).astype(jnp.float32)

    vmem_spec = pl.BlockSpec(memory_space=pltpu.MemorySpace.VMEM)
    return pl.pallas_call(
        _fused_kernel,
        out_shape=jax.ShapeDtypeStruct((B, COUT), jnp.float32),
        in_specs=[vmem_spec] * 5,
        out_specs=vmem_spec,
    )(rgb_chw, mask_flat, pc_t, pack1, pack2)


# ----------------------------------------------------------------------------
# Synthetic inner model + ModelWrapper-equivalent forward.
# ----------------------------------------------------------------------------
def synthetic_model(params, rgb, pc_list, mask_list):
    """Mirrors the wrapped model's call signature: model(rgb, [pc], [mask])."""
    pc = pc_list[0]
    mask = mask_list[0]

    B, Cin, H, W = rgb.shape                                   # NCHW
    # Pure reshapes (no NCHW->NHWC transpose needed with the [B, C, HW] layout).
    rgb_chw = rgb.reshape(B, Cin, H * W).astype(jnp.float32)   # [B, 3, HW]
    mask_flat = mask.reshape(B, 1, H * W).astype(jnp.float32)  # [B, 1, HW]
    pc_t = jnp.transpose(pc, (0, 2, 1)).astype(jnp.float32)    # [B, 3, N] (tiny)

    fused = fused_forward(params, rgb_chw, mask_flat, pc_t)
    return (fused,)                                            # model returns a tuple


def model_wrapper_forward(params, rgb, pc, mask):
    """Equivalent of ModelWrapper.forward: out = model(rgb, [pc], [mask]); return out[0]."""
    out = synthetic_model(params, rgb, [pc], [mask])
    return out[0]


# ----------------------------------------------------------------------------
# Pure-JAX reference (original, non-rewritten formulation) for a sanity check.
# ----------------------------------------------------------------------------
def reference_forward(params, rgb, pc, mask):
    B, Cin, H, W = rgb.shape
    rgb_flat = jnp.transpose(rgb, (0, 2, 3, 1)).reshape(B, H * W, Cin)
    mask_flat = mask.reshape(B, H * W, 1).astype(jnp.float32)
    feat = jnp.einsum("bpc,cd->bpd", rgb_flat, params["w_rgb"]) + params["b_rgb"]
    rgb_vec = jnp.sum(feat * mask_flat, axis=1) / jnp.maximum(
        jnp.sum(mask_flat, axis=1), 1e-6)
    pfeat = jnp.einsum("bnc,cd->bnd", pc, params["w_pc"]) + params["b_pc"]
    pc_vec = jnp.max(pfeat, axis=1)
    fused_in = jnp.concatenate([rgb_vec, pc_vec], axis=-1)
    return fused_in @ params["w_fuse"] + params["b_fuse"]


if __name__ == "__main__":
    # Small shapes consistent with the forward: rgb NCHW, pc points, binary mask.
    B, Cin, H, W = 2, 3, 16, 16
    N_PTS = 128
    C = 32
    COUT = 16

    # Deterministic parameter init (synthetic; no checkpoint loading).
    kp = jax.random.PRNGKey(42)
    k1, k2, k3 = jax.random.split(kp, 3)
    params = {
        "w_rgb": jax.random.normal(k1, (Cin, C), jnp.float32) * 0.1,
        "b_rgb": jnp.linspace(-0.1, 0.1, C, dtype=jnp.float32).reshape(1, C),
        "w_pc": jax.random.normal(k2, (3, C), jnp.float32) * 0.1,
        "b_pc": jnp.linspace(0.0, 0.2, C, dtype=jnp.float32).reshape(1, C),
        "w_fuse": jax.random.normal(k3, (2 * C, COUT), jnp.float32) * 0.1,
        "b_fuse": jnp.linspace(-0.05, 0.05, COUT, dtype=jnp.float32).reshape(1, COUT),
    }

    # Deterministic example inputs.
    ki = jax.random.PRNGKey(0)
    ka, kb, kc = jax.random.split(ki, 3)
    rgb = jax.random.normal(ka, (B, Cin, H, W), jnp.float32)          # NCHW
    pc = jax.random.normal(kb, (B, N_PTS, 3), jnp.float32)            # point cloud
    mask = (jax.random.uniform(kc, (B, 1, H, W)) > 0.5).astype(jnp.float32)

    out = model_wrapper_forward(params, rgb, pc, mask)
    out = jax.block_until_ready(out)

    ref = reference_forward(params, rgb, pc, mask)
    assert out.shape == (B, COUT), out.shape
    # Exact division now used in-kernel -> tight tolerance (only f32 reorder noise).
    assert jnp.allclose(out, ref, atol=1e-4, rtol=1e-4), (
        f"max abs err {jnp.max(jnp.abs(out - ref))}")

    print("KERNEL_OK")
</pallas_src>

<mosaic_0001>
module attributes {stable_mosaic.version = 11 : i64} {
  func.func @_fused_kernel(%arg0: memref<2x3x256xf32, #tpu.memory_space<vmem>>, %arg1: memref<2x1x256xf32, #tpu.memory_space<vmem>>, %arg2: memref<2x3x128xf32, #tpu.memory_space<vmem>>, %arg3: memref<32x8xf32, #tpu.memory_space<vmem>>, %arg4: memref<33x32xf32, #tpu.memory_space<vmem>>, %arg5: memref<2x16xf32, #tpu.memory_space<vmem>>) attributes {dimension_semantics = [], scalar_prefetch = 0 : i64, scratch_operands = 0 : i64, tpu.core_type = #tpu.core_type<tc>} {
    %c0 = arith.constant 0 : index
    %c0_0 = arith.constant 0 : index
    %0 = vector.load %arg3[%c0, %c0_0] : memref<32x8xf32, #tpu.memory_space<vmem>>, vector<32x3xf32>
    %c0_1 = arith.constant 0 : index
    %c3 = arith.constant 3 : index
    %1 = vector.load %arg3[%c0_1, %c3] : memref<32x8xf32, #tpu.memory_space<vmem>>, vector<32x1xf32>
    %c0_2 = arith.constant 0 : index
    %c4 = arith.constant 4 : index
    %2 = vector.load %arg3[%c0_2, %c4] : memref<32x8xf32, #tpu.memory_space<vmem>>, vector<32x3xf32>
    %c0_3 = arith.constant 0 : index
    %c7 = arith.constant 7 : index
    %3 = vector.load %arg3[%c0_3, %c7] : memref<32x8xf32, #tpu.memory_space<vmem>>, vector<32x1xf32>
    %c0_4 = arith.constant 0 : index
    %c0_5 = arith.constant 0 : index
    %4 = vector.load %arg4[%c0_4, %c0_5] : memref<33x32xf32, #tpu.memory_space<vmem>>, vector<32x16xf32>
    %c0_6 = arith.constant 0 : index
    %c16 = arith.constant 16 : index
    %5 = vector.load %arg4[%c0_6, %c16] : memref<33x32xf32, #tpu.memory_space<vmem>>, vector<32x16xf32>
    %c32 = arith.constant 32 : index
    %c0_7 = arith.constant 0 : index
    %6 = vector.load %arg4[%c32, %c0_7] : memref<33x32xf32, #tpu.memory_space<vmem>>, vector<1x16xf32>
    %c0_8 = arith.constant 0 : index
    %c0_9 = arith.constant 0 : index
    %c0_10 = arith.constant 0 : index
    %7 = vector.load %arg0[%c0_8, %c0_9, %c0_10] : memref<2x3x256xf32, #tpu.memory_space<vmem>>, vector<1x3x256xf32>
    %8 = vector.shape_cast %7 : vector<1x3x256xf32> to vector<3x256xf32>
    %c0_11 = arith.constant 0 : index
    %c0_12 = arith.constant 0 : index
    %c0_13 = arith.constant 0 : index
    %9 = vector.load %arg1[%c0_11, %c0_12, %c0_13] : memref<2x1x256xf32, #tpu.memory_space<vmem>>, vector<1x1x256xf32>
    %10 = vector.shape_cast %9 : vector<1x1x256xf32> to vector<1x256xf32>
    %c0_14 = arith.constant 0 : index
    %c0_15 = arith.constant 0 : index
    %c0_16 = arith.constant 0 : index
    %11 = vector.load %arg2[%c0_14, %c0_15, %c0_16] : memref<2x3x128xf32, #tpu.memory_space<vmem>>, vector<1x3x128xf32>
    %12 = vector.shape_cast %11 : vector<1x3x128xf32> to vector<3x128xf32>
    %13 = vector.broadcast %10 : vector<1x256xf32> to vector<3x256xf32>
    %14 = arith.mulf %8, %13 : vector<3x256xf32>
    %15 = tpu.concatenate %14, %10 in 0 : vector<3x256xf32>, vector<1x256xf32> -> vector<4x256xf32>
    %cst = arith.constant dense<0.000000e+00> : vector<4xf32>
    %16 = vector.multi_reduction <add>, %15, %cst [1] : vector<4x256xf32> to vector<4xf32>
    %17 = vector.shape_cast %16 : vector<4xf32> to vector<4x1xf32>
    %18 = vector.extract_strided_slice %17 {offsets = [3, 0], sizes = [1, 1], strides = [1, 1]} : vector<4x1xf32> to vector<1x1xf32>
    %cst_17 = arith.constant 9.99999997E-7 : f32
    %19 = vector.broadcast %cst_17 : f32 to vector<1x1xf32>
    %20 = arith.maximumf %18, %19 : vector<1x1xf32>
    %cst_18 = arith.constant 1.000000e+00 : f32
    %21 = vector.broadcast %cst_18 : f32 to vector<1x1xf32>
    %22 = arith.divf %21, %20 : vector<1x1xf32>
    %23 = vector.extract_strided_slice %0 {offsets = [0, 0], sizes = [32, 1], strides = [1, 1]} : vector<32x3xf32> to vector<32x1xf32>
    %24 = vector.extract_strided_slice %17 {offsets = [0, 0], sizes = [1, 1], strides = [1, 1]} : vector<4x1xf32> to vector<1x1xf32>
    %25 = vector.broadcast %24 : vector<1x1xf32> to vector<32x1xf32>
    %26 = arith.mulf %23, %25 : vector<32x1xf32>
    %27 = vector.extract_strided_slice %0 {offsets = [0, 1], sizes = [32, 1], strides = [1, 1]} : vector<32x3xf32> to vector<32x1xf32>
    %28 = vector.extract_strided_slice %17 {offsets = [1, 0], sizes = [1, 1], strides = [1, 1]} : vector<4x1xf32> to vector<1x1xf32>
    %29 = vector.broadcast %28 : vector<1x1xf32> to vector<32x1xf32>
    %30 = arith.mulf %27, %29 : vector<32x1xf32>
    %31 = arith.addf %26, %30 : vector<32x1xf32>
    %32 = vector.extract_strided_slice %0 {offsets = [0, 2], sizes = [32, 1], strides = [1, 1]} : vector<32x3xf32> to vector<32x1xf32>
    %33 = vector.extract_strided_slice %17 {offsets = [2, 0], sizes = [1, 1], strides = [1, 1]} : vector<4x1xf32> to vector<1x1xf32>
    %34 = vector.broadcast %33 : vector<1x1xf32> to vector<32x1xf32>
    %35 = arith.mulf %32, %34 : vector<32x1xf32>
    %36 = arith.addf %31, %35 : vector<32x1xf32>
    %37 = vector.broadcast %22 : vector<1x1xf32> to vector<32x1xf32>
    %38 = arith.mulf %36, %37 : vector<32x1xf32>
    %39 = arith.mulf %18, %22 : vector<1x1xf32>
    %40 = vector.broadcast %39 : vector<1x1xf32> to vector<32x1xf32>
    %41 = arith.mulf %1, %40 : vector<32x1xf32>
    %42 = arith.addf %38, %41 : vector<32x1xf32>
    %43 = vector.extract_strided_slice %2 {offsets = [0, 0], sizes = [32, 1], strides = [1, 1]} : vector<32x3xf32> to vector<32x1xf32>
    %44 = vector.extract_strided_slice %12 {offsets = [0, 0], sizes = [1, 128], strides = [1, 1]} : vector<3x128xf32> to vector<1x128xf32>
    %45 = vector.broadcast %43 : vector<32x1xf32> to vector<32x128xf32>
    %46 = vector.broadcast %44 : vector<1x128xf32> to vector<32x128xf32>
    %47 = arith.mulf %45, %46 : vector<32x128xf32>
    %48 = vector.extract_strided_slice %2 {offsets = [0, 1], sizes = [32, 1], strides = [1, 1]} : vector<32x3xf32> to vector<32x1xf32>
    %49 = vector.extract_strided_slice %12 {offsets = [1, 0], sizes = [1, 128], strides = [1, 1]} : vector<3x128xf32> to vector<1x128xf32>
    %50 = vector.broadcast %48 : vector<32x1xf32> to vector<32x128xf32>
    %51 = vector.broadcast %49 : vector<1x128xf32> to vector<32x128xf32>
    %52 = arith.mulf %50, %51 : vector<32x128xf32>
    %53 = arith.addf %47, %52 : vector<32x128xf32>
    %54 = vector.extract_strided_slice %2 {offsets = [0, 2], sizes = [32, 1], strides = [1, 1]} : vector<32x3xf32> to vector<32x1xf32>
    %55 = vector.extract_strided_slice %12 {offsets = [2, 0], sizes = [1, 128], strides = [1, 1]} : vector<3x128xf32> to vector<1x128xf32>
    %56 = vector.broadcast %54 : vector<32x1xf32> to vector<32x128xf32>
    %57 = vector.broadcast %55 : vector<1x128xf32> to vector<32x128xf32>
    %58 = arith.mulf %56, %57 : vector<32x128xf32>
    %59 = arith.addf %53, %58 : vector<32x128xf32>
    %60 = vector.broadcast %3 : vector<32x1xf32> to vector<32x128xf32>
    %61 = arith.addf %59, %60 : vector<32x128xf32>
    %cst_19 = arith.constant dense<0xFF800000> : vector<32xf32>
    %62 = vector.multi_reduction <maximumf>, %61, %cst_19 [1] : vector<32x128xf32> to vector<32xf32>
    %63 = vector.shape_cast %62 : vector<32xf32> to vector<32x1xf32>
    %64 = vector.broadcast %42 : vector<32x1xf32> to vector<32x16xf32>
    %65 = arith.mulf %64, %4 : vector<32x16xf32>
    %66 = vector.broadcast %63 : vector<32x1xf32> to vector<32x16xf32>
    %67 = arith.mulf %66, %5 : vector<32x16xf32>
    %68 = arith.addf %65, %67 : vector<32x16xf32>
    %cst_20 = arith.constant dense<0.000000e+00> : vector<16xf32>
    %69 = vector.multi_reduction <add>, %68, %cst_20 [0] : vector<32x16xf32> to vector<16xf32>
    %70 = vector.shape_cast %69 : vector<16xf32> to vector<1x16xf32>
    %71 = arith.addf %70, %6 : vector<1x16xf32>
    %c1 = arith.constant 1 : index
    %c0_21 = arith.constant 0 : index
    %c0_22 = arith.constant 0 : index
    %72 = vector.load %arg0[%c1, %c0_21, %c0_22] : memref<2x3x256xf32, #tpu.memory_space<vmem>>, vector<1x3x256xf32>
    %73 = vector.shape_cast %72 : vector<1x3x256xf32> to vector<3x256xf32>
    %c1_23 = arith.constant 1 : index
    %c0_24 = arith.constant 0 : index
    %c0_25 = arith.constant 0 : index
    %74 = vector.load %arg1[%c1_23, %c0_24, %c0_25] : memref<2x1x256xf32, #tpu.memory_space<vmem>>, vector<1x1x256xf32>
    %75 = vector.shape_cast %74 : vector<1x1x256xf32> to vector<1x256xf32>
    %c1_26 = arith.constant 1 : index
    %c0_27 = arith.constant 0 : index
    %c0_28 = arith.constant 0 : index
    %76 = vector.load %arg2[%c1_26, %c0_27, %c0_28] : memref<2x3x128xf32, #tpu.memory_space<vmem>>, vector<1x3x128xf32>
    %77 = vector.shape_cast %76 : vector<1x3x128xf32> to vector<3x128xf32>
    %78 = vector.broadcast %75 : vector<1x256xf32> to vector<3x256xf32>
    %79 = arith.mulf %73, %78 : vector<3x256xf32>
    %80 = tpu.concatenate %79, %75 in 0 : vector<3x256xf32>, vector<1x256xf32> -> vector<4x256xf32>
    %cst_29 = arith.constant dense<0.000000e+00> : vector<4xf32>
    %81 = vector.multi_reduction <add>, %80, %cst_29 [1] : vector<4x256xf32> to vector<4xf32>
    %82 = vector.shape_cast %81 : vector<4xf32> to vector<4x1xf32>
    %83 = vector.extract_strided_slice %82 {offsets = [3, 0], sizes = [1, 1], strides = [1, 1]} : vector<4x1xf32> to vector<1x1xf32>
    %cst_30 = arith.constant 9.99999997E-7 : f32
    %84 = vector.broadcast %cst_30 : f32 to vector<1x1xf32>
    %85 = arith.maximumf %83, %84 : vector<1x1xf32>
    %cst_31 = arith.constant 1.000000e+00 : f32
    %86 = vector.broadcast %cst_31 : f32 to vector<1x1xf32>
    %87 = arith.divf %86, %85 : vector<1x1xf32>
    %88 = vector.extract_strided_slice %0 {offsets = [0, 0], sizes = [32, 1], strides = [1, 1]} : vector<32x3xf32> to vector<32x1xf32>
    %89 = vector.extract_strided_slice %82 {offsets = [0, 0], sizes = [1, 1], strides = [1, 1]} : vector<4x1xf32> to vector<1x1xf32>
    %90 = vector.broadcast %89 : vector<1x1xf32> to vector<32x1xf32>
    %91 = arith.mulf %88, %90 : vector<32x1xf32>
    %92 = vector.extract_strided_slice %0 {offsets = [0, 1], sizes = [32, 1], strides = [1, 1]} : vector<32x3xf32> to vector<32x1xf32>
    %93 = vector.extract_strided_slice %82 {offsets = [1, 0], sizes = [1, 1], strides = [1, 1]} : vector<4x1xf32> to vector<1x1xf32>
    %94 = vector.broadcast %93 : vector<1x1xf32> to vector<32x1xf32>
    %95 = arith.mulf %92, %94 : vector<32x1xf32>
    %96 = arith.addf %91, %95 : vector<32x1xf32>
    %97 = vector.extract_strided_slice %0 {offsets = [0, 2], sizes = [32, 1], strides = [1, 1]} : vector<32x3xf32> to vector<32x1xf32>
    %98 = vector.extract_strided_slice %82 {offsets = [2, 0], sizes = [1, 1], strides = [1, 1]} : vector<4x1xf32> to vector<1x1xf32>
    %99 = vector.broadcast %98 : vector<1x1xf32> to vector<32x1xf32>
    %100 = arith.mulf %97, %99 : vector<32x1xf32>
    %101 = arith.addf %96, %100 : vector<32x1xf32>
    %102 = vector.broadcast %87 : vector<1x1xf32> to vector<32x1xf32>
    %103 = arith.mulf %101, %102 : vector<32x1xf32>
    %104 = arith.mulf %83, %87 : vector<1x1xf32>
    %105 = vector.broadcast %104 : vector<1x1xf32> to vector<32x1xf32>
    %106 = arith.mulf %1, %105 : vector<32x1xf32>
    %107 = arith.addf %103, %106 : vector<32x1xf32>
    %108 = vector.extract_strided_slice %2 {offsets = [0, 0], sizes = [32, 1], strides = [1, 1]} : vector<32x3xf32> to vector<32x1xf32>
    %109 = vector.extract_strided_slice %77 {offsets = [0, 0], sizes = [1, 128], strides = [1, 1]} : vector<3x128xf32> to vector<1x128xf32>
    %110 = vector.broadcast %108 : vector<32x1xf32> to vector<32x128xf32>
    %111 = vector.broadcast %109 : vector<1x128xf32> to vector<32x128xf32>
    %112 = arith.mulf %110, %111 : vector<32x128xf32>
    %113 = vector.extract_strided_slice %2 {offsets = [0, 1], sizes = [32, 1], strides = [1, 1]} : vector<32x3xf32> to vector<32x1xf32>
    %114 = vector.extract_strided_slice %77 {offsets = [1, 0], sizes = [1, 128], strides = [1, 1]} : vector<3x128xf32> to vector<1x128xf32>
    %115 = vector.broadcast %113 : vector<32x1xf32> to vector<32x128xf32>
    %116 = vector.broadcast %114 : vector<1x128xf32> to vector<32x128xf32>
    %117 = arith.mulf %115, %116 : vector<32x128xf32>
    %118 = arith.addf %112, %117 : vector<32x128xf32>
    %119 = vector.extract_strided_slice %2 {offsets = [0, 2], sizes = [32, 1], strides = [1, 1]} : vector<32x3xf32> to vector<32x1xf32>
    %120 = vector.extract_strided_slice %77 {offsets = [2, 0], sizes = [1, 128], strides = [1, 1]} : vector<3x128xf32> to vector<1x128xf32>
    %121 = vector.broadcast %119 : vector<32x1xf32> to vector<32x128xf32>
    %122 = vector.broadcast %120 : vector<1x128xf32> to vector<32x128xf32>
    %123 = arith.mulf %121, %122 : vector<32x128xf32>
    %124 = arith.addf %118, %123 : vector<32x128xf32>
    %125 = vector.broadcast %3 : vector<32x1xf32> to vector<32x128xf32>
    %126 = arith.addf %124, %125 : vector<32x128xf32>
    %cst_32 = arith.constant dense<0xFF800000> : vector<32xf32>
    %127 = vector.multi_reduction <maximumf>, %126, %cst_32 [1] : vector<32x128xf32> to vector<32xf32>
    %128 = vector.shape_cast %127 : vector<32xf32> to vector<32x1xf32>
    %129 = vector.broadcast %107 : vector<32x1xf32> to vector<32x16xf32>
    %130 = arith.mulf %129, %4 : vector<32x16xf32>
    %131 = vector.broadcast %128 : vector<32x1xf32> to vector<32x16xf32>
    %132 = arith.mulf %131, %5 : vector<32x16xf32>
    %133 = arith.addf %130, %132 : vector<32x16xf32>
    %cst_33 = arith.constant dense<0.000000e+00> : vector<16xf32>
    %134 = vector.multi_reduction <add>, %133, %cst_33 [0] : vector<32x16xf32> to vector<16xf32>
    %135 = vector.shape_cast %134 : vector<16xf32> to vector<1x16xf32>
    %136 = arith.addf %135, %6 : vector<1x16xf32>
    %137 = tpu.concatenate %71, %136 in 0 : vector<1x16xf32>, vector<1x16xf32> -> vector<2x16xf32>
    %c0_34 = arith.constant 0 : index
    %c0_35 = arith.constant 0 : index
    %138 = vector.load %arg5[%c0_34, %c0_35] : memref<2x16xf32, #tpu.memory_space<vmem>>, vector<2x16xf32>
    tpu.vector_store %arg5[%c0_34, %c0_35], %137 {strides = array<i32>} : memref<2x16xf32, #tpu.memory_space<vmem>>, vector<2x16xf32>,
    return
  }
}

</mosaic_0001>

<llo_original>
// kernel: tpu_custom_call.1
$region0: #{tpu_custom_call.1}
  #allocation0 [shape = 'u32[]', space=smem, size = 0x4, offset = 0x4, fixed_abs, tag = 'smem constant byte address 0x4 - core index']
  #allocation1 [shape = 'u32[72,128]{1,0:T(1,128)}', space=vmem, size = 0x9000, scoped, tag = 'internal scratch']
  %s0 = inlined_call_operand.vmem [shape: f32[2,3,256], index: 0, kind: input, shape index: {}]
  %s1 = inlined_call_operand.vmem [shape: f32[2,1,256], index: 1, kind: input, shape index: {}]
  %s2 = inlined_call_operand.vmem [shape: f32[2,3,128], index: 2, kind: input, shape index: {}]
  %s3 = inlined_call_operand.vmem [shape: f32[32,8], index: 3, kind: input, shape index: {}]
  %s4 = inlined_call_operand.vmem [shape: f32[33,32], index: 4, kind: input, shape index: {}]
  %s5 = inlined_call_operand.hbm [shape: f32[2,16], index: 5, kind: output, shape index: {}]
  %s6 = sld [smem:[#allocation0]]
  $region30: #{tpu_custom_call.1} parent=0
    _
  %s8 = ssub.s32 1, %s6
  %s9 = scalar_select 0, %s8, %s6
  $region1: #{tpu_custom_call.1} parent=0
    #allocation2 [shape = 'u8[1024]{0}', space=vmem, size = 0x400, scoped, tag = 'output window, operand 0, single buffered']
    #allocation3 [shape = 's32[1]{0}', space=sflag, size = 0x4, scoped, tag = 'scoped memory for tpu_custom_call.1']
    %10 = vsyncpa [#allocation3], 0
    // Predicated region
    $region2: #{tpu_custom_call.1} parent=1 // pred_check
      _
    $region3: #{tpu_custom_call.1} parent=1 // pred_check_branch
      %12 = sbr.rel (0) target = $region5
    $region4: #{tpu_custom_call.1} parent=1 // pred_region
      _
    $region5: #{tpu_custom_call.1} parent=1 // pred_fallthru
      _
    // Predicated region
    $region6: #{tpu_custom_call.1} parent=1 // pred_check
      _
    $region7: #{tpu_custom_call.1} parent=1 // pred_check_branch
      %14 = sbr.rel (0) target = $region9
    $region8: #{tpu_custom_call.1} parent=1 // pred_region
      _
    $region9: #{tpu_custom_call.1} parent=1 // pred_fallthru
      _
    // Predicated region
    $region10: #{tpu_custom_call.1} parent=1 // pred_check
      _
    $region11: #{tpu_custom_call.1} parent=1 // pred_check_branch
      %16 = sbr.rel (0) target = $region13
    $region12: #{tpu_custom_call.1} parent=1 // pred_region
      _
    $region13: #{tpu_custom_call.1} parent=1 // pred_fallthru
      _
    // Predicated region
    $region14: #{tpu_custom_call.1} parent=1 // pred_check
      _
    $region15: #{tpu_custom_call.1} parent=1 // pred_check_branch
      %18 = sbr.rel (0) target = $region17
    $region16: #{tpu_custom_call.1} parent=1 // pred_region
      _
    $region17: #{tpu_custom_call.1} parent=1 // pred_fallthru
      _
    // Predicated region
    $region18: #{tpu_custom_call.1} parent=1 // pred_check
      _
    $region19: #{tpu_custom_call.1} parent=1 // pred_check_branch
      %20 = sbr.rel (0) target = $region21
    $region20: #{tpu_custom_call.1} parent=1 // pred_region
      _
    $region21: #{tpu_custom_call.1} parent=1 // pred_fallthru
      _
    %v21 = vld [vmem:[%s3] sm:$0xff]
    %v22 = vld [vmem:[%s3 + $0x8] sm:$0xff]
    %v23 = vld [vmem:[%s3 + $0x10] sm:$0xff]
    %v24 = vld [vmem:[%s3 + $0x18] sm:$0xff]
    %v25 = vld [vmem:[%s4] sm:$0xff]
    %v26 = vld [vmem:[%s4 + $0x8] sm:$0xff]
    %v27 = vld [vmem:[%s4 + $0x10] sm:$0xff]
    %v28 = vld [vmem:[%s4 + $0x18] sm:$0xff]
    %v29 = vld [vmem:[%s4 + $0x20] sm:$0x1]
    %v30 = vld [vmem:[%s0] sm:$0x77]
    %v31 = vld [vmem:[%s1] sm:$0x3]
    %v32 = vld [vmem:[%s2] sm:$0x7]
    %v34 = vperm.slane %v31, 0
    %v35 = vperm.slane %v31, 1
    %v36 = vrot.slane %v35, 4
    %vm37 = vcmask 1043456
    %v38 = vsel %vm37, %v34, %v36
    %v40 = vmul.f32 %v30, %v38
    %42 = vst [vmem:[#allocation1] ss:$2 sm:$0xff] %v40
    %v43 = vld.sshfl [vmem:[#allocation1] sm:$0xff pattern:$0x75316420]
    %v44 = vld.sshfl [vmem:[#allocation1 + $0x8] sm:$0xff pattern:$0x75316420]
    %vm49 = vcmask 1042432
    %v50 = vsel %vm49, %v43, %v34
    %v51 = vsel %vm49, %v44, %v35
    %v52 = vsel %vm37, %v50, 0.0
    %v53 = vsel %vm37, %v51, 0.0
    %v54 = vadd.f32 %v52, %v53
    %55 = vadd.xlane.f32.xlu0 %v54
    %v56 = vpop.xlane.xlu0 %55
    %v57 = vmax.f32 %v56, 1e-06
    %v58 = vrcp.pop %v57
    %v59 = vmul.f32 %v57, %v58
    %v60 = vsub.f32 1.0, %v59
    %v61 = vmul.f32 %v58, %v60
    %v62 = vadd.f32 %v58, %v61
    %vm63 = vweird.f32 %v57
    %vm64 = vweird.f32 %v58
    %vm65 = vmor %vm63, %vm64
    %v66 = vsel %vm65, %v58, %v62
    %v67 = vand.u32 2147483647, %v57
    %vm68 = vcmp.eq.f32.partialorder %v67, 8.507059e+37
    %v69 = vand.u32 %v57, 2147483648
    %v70 = vor.u32 1.1754944e-38, %v69
    %v71 = vsel %vm68, %v70, %v66
    %v72 = vmul.f32 1.0, %v71
    %v73 = vperm.slane %v56, 0
    %v74 = vmul.f32 %v21, %v73
    %v75 = vmul.f32 %v22, %v73
    %v76 = vmul.f32 %v23, %v73
    %v77 = vmul.f32 %v24, %v73
    %v78 = vperm.slane %v56, 1
    %v79 = vmul.f32 %v21, %v78
    %v80 = vmul.f32 %v22, %v78
    %v81 = vmul.f32 %v23, %v78
    %v82 = vmul.f32 %v24, %v78
    %87 = vrot.lane.b32.xlu0 %v79, 127
    %v88 = vpop.permute.xlu0 %87
    %89 = vrot.lane.b32.xlu0 %v80, 127
    %v90 = vpop.permute.xlu0 %89
    %91 = vrot.lane.b32.xlu0 %v81, 127
    %v92 = vpop.permute.xlu0 %91
    %93 = vrot.lane.b32.xlu0 %v82, 127
    %v94 = vpop.permute.xlu0 %93
    %v99 = vadd.f32 %v74, %v88
    %v100 = vadd.f32 %v75, %v90
    %v101 = vadd.f32 %v76, %v92
    %v102 = vadd.f32 %v77, %v94
    %v103 = vperm.slane %v56, 2
    %v104 = vmul.f32 %v21, %v103
    %v105 = vmul.f32 %v22, %v103
    %v106 = vmul.f32 %v23, %v103
    %v107 = vmul.f32 %v24, %v103
    %112 = vrot.lane.b32.xlu0 %v104, 126
    %v113 = vpop.permute.xlu0 %112
    %114 = vrot.lane.b32.xlu0 %v105, 126
    %v115 = vpop.permute.xlu0 %114
    %116 = vrot.lane.b32.xlu0 %v106, 126
    %v117 = vpop.permute.xlu0 %116
    %118 = vrot.lane.b32.xlu0 %v107, 126
    %v119 = vpop.permute.xlu0 %118
    %v124 = vadd.f32 %v99, %v113
    %v125 = vadd.f32 %v100, %v115
    %v126 = vadd.f32 %v101, %v117
    %v127 = vadd.f32 %v102, %v119
    %v128 = vperm.slane %v72, 3
    %v129 = vmul.f32 %v124, %v128
    %v130 = vmul.f32 %v125, %v128
    %v131 = vmul.f32 %v126, %v128
    %v132 = vmul.f32 %v127, %v128
    %v133 = vmul.f32 %v56, %v72
    %v134 = vperm.slane %v133, 3
    %v135 = vmul.f32 %v21, %v134
    %v136 = vmul.f32 %v22, %v134
    %v137 = vmul.f32 %v23, %v134
    %v138 = vmul.f32 %v24, %v134
    %143 = vrot.lane.b32.xlu0 %v135, 125
    %v144 = vpop.permute.xlu0 %143
    %145 = vrot.lane.b32.xlu0 %v136, 125
    %v146 = vpop.permute.xlu0 %145
    %147 = vrot.lane.b32.xlu0 %v137, 125
    %v148 = vpop.permute.xlu0 %147
    %149 = vrot.lane.b32.xlu0 %v138, 125
    %v150 = vpop.permute.xlu0 %149
    %v155 = vadd.f32 %v129, %v144
    %v156 = vadd.f32 %v130, %v146
    %v157 = vadd.f32 %v131, %v148
    %v158 = vadd.f32 %v132, %v150
    %160 = vset.pattern.permute.xlu0 4
    %161 = vperm.xlu0 %160, %v21
    %v162 = vpop.permute.xlu0 %161
    %165 = vset.pattern.permute.xlu0 4
    %166 = vperm.xlu0 %165, %v22
    %v167 = vpop.permute.xlu0 %166
    %170 = vset.pattern.permute.xlu0 4
    %171 = vperm.xlu0 %170, %v23
    %v172 = vpop.permute.xlu0 %171
    %175 = vset.pattern.permute.xlu0 4
    %176 = vperm.xlu0 %175, %v24
    %v177 = vpop.permute.xlu0 %176
    %v179 = vperm.slane %v32, 0
    %v180 = vmul.f32 %v162, %v179
    %v181 = vmul.f32 %v167, %v179
    %v182 = vmul.f32 %v172, %v179
    %v183 = vmul.f32 %v177, %v179
    %184 = vset.pattern.permute.xlu0 5
    %185 = vperm.xlu0 %184, %v21
    %v186 = vpop.permute.xlu0 %185
    %188 = vset.pattern.permute.xlu0 5
    %189 = vperm.xlu0 %188, %v22
    %v190 = vpop.permute.xlu0 %189
    %192 = vset.pattern.permute.xlu0 5
    %193 = vperm.xlu0 %192, %v23
    %v194 = vpop.permute.xlu0 %193
    %196 = vset.pattern.permute.xlu0 5
    %197 = vperm.xlu0 %196, %v24
    %v198 = vpop.permute.xlu0 %197
    %v200 = vperm.slane %v32, 1
    %v201 = vmul.f32 %v186, %v200
    %v202 = vmul.f32 %v190, %v200
    %v203 = vmul.f32 %v194, %v200
    %v204 = vmul.f32 %v198, %v200
    %v205 = vadd.f32 %v180, %v201
    %v206 = vadd.f32 %v181, %v202
    %v207 = vadd.f32 %v182, %v203
    %v208 = vadd.f32 %v183, %v204
    %209 = vset.pattern.permute.xlu0 6
    %210 = vperm.xlu0 %209, %v21
    %v211 = vpop.permute.xlu0 %210
    %213 = vset.pattern.permute.xlu0 6
    %214 = vperm.xlu0 %213, %v22
    %v215 = vpop.permute.xlu0 %214
    %217 = vset.pattern.permute.xlu0 6
    %218 = vperm.xlu0 %217, %v23
    %v219 = vpop.permute.xlu0 %218
    %221 = vset.pattern.permute.xlu0 6
    %222 = vperm.xlu0 %221, %v24
    %v223 = vpop.permute.xlu0 %222
    %v225 = vperm.slane %v32, 2
    %v226 = vmul.f32 %v211, %v225
    %v227 = vmul.f32 %v215, %v225
    %v228 = vmul.f32 %v219, %v225
    %v229 = vmul.f32 %v223, %v225
    %v230 = vadd.f32 %v205, %v226
    %v231 = vadd.f32 %v206, %v227
    %v232 = vadd.f32 %v207, %v228
    %v233 = vadd.f32 %v208, %v229
    %234 = vset.pattern.permute.xlu0 7
    %235 = vperm.xlu0 %234, %v21
    %v236 = vpop.permute.xlu0 %235
    %238 = vset.pattern.permute.xlu0 7
    %239 = vperm.xlu0 %238, %v22
    %v240 = vpop.permute.xlu0 %239
    %242 = vset.pattern.permute.xlu0 7
    %243 = vperm.xlu0 %242, %v23
    %v244 = vpop.permute.xlu0 %243
    %246 = vset.pattern.permute.xlu0 7
    %247 = vperm.xlu0 %246, %v24
    %v248 = vpop.permute.xlu0 %247
    %v250 = vadd.f32 %v230, %v236
    %v251 = vadd.f32 %v231, %v240
    %v252 = vadd.f32 %v232, %v244
    %v253 = vadd.f32 %v233, %v248
    %254 = vmax.xlane.f32.xlu0 %v250
    %v255 = vpop.xlane.xlu0 %254
    %256 = vmax.xlane.f32.xlu0 %v251
    %v257 = vpop.xlane.xlu0 %256
    %258 = vmax.xlane.f32.xlu0 %v252
    %v259 = vpop.xlane.xlu0 %258
    %260 = vmax.xlane.f32.xlu0 %v253
    %v261 = vpop.xlane.xlu0 %260
    %263 = vset.pattern.permute.xlu0 0
    %264 = vperm.xlu0 %263, %v155
    %v265 = vpop.permute.xlu0 %264
    %268 = vset.pattern.permute.xlu0 0
    %269 = vperm.xlu0 %268, %v156
    %v270 = vpop.permute.xlu0 %269
    %273 = vset.pattern.permute.xlu0 0
    %274 = vperm.xlu0 %273, %v157
    %v275 = vpop.permute.xlu0 %274
    %278 = vset.pattern.permute.xlu0 0
    %279 = vperm.xlu0 %278, %v158
    %v280 = vpop.permute.xlu0 %279
    %v282 = vmul.f32 %v265, %v25
    %v283 = vmul.f32 %v270, %v26
    %v284 = vmul.f32 %v275, %v27
    %v285 = vmul.f32 %v280, %v28
    %v286 = vmul.f32 %v255, %v25
    %v287 = vmul.f32 %v257, %v26
    %v288 = vmul.f32 %v259, %v27
    %v289 = vmul.f32 %v261, %v28
    %294 = vrot.lane.b32.xlu0 %v286, 112
    %v295 = vpop.permute.xlu0 %294
    %296 = vrot.lane.b32.xlu0 %v287, 112
    %v297 = vpop.permute.xlu0 %296
    %298 = vrot.lane.b32.xlu0 %v288, 112
    %v299 = vpop.permute.xlu0 %298
    %300 = vrot.lane.b32.xlu0 %v289, 112
    %v301 = vpop.permute.xlu0 %300
    %v306 = vadd.f32 %v282, %v295
    %v307 = vadd.f32 %v283, %v297
    %v308 = vadd.f32 %v284, %v299
    %v309 = vadd.f32 %v285, %v301
    %vm310 = vcmask 130048
    %v311 = vsel %vm310, %v306, 0.0
    %v312 = vsel %vm310, %v307, 0.0
    %v313 = vadd.f32 %v311, %v312
    %v314 = vsel %vm310, %v308, 0.0
    %v315 = vadd.f32 %v313, %v314
    %v316 = vsel %vm310, %v309, 0.0
    %v317 = vadd.f32 %v315, %v316
    %v318 = vrot.slane %v317, 4
    %v319 = vadd.f32 %v317, %v318
    %v320 = vrot.slane %v319, 2
    %v321 = vadd.f32 %v319, %v320
    %v322 = vrot.slane %v321, 1
    %v323 = vadd.f32 %v321, %v322
    %v324 = vadd.f32 %v323, %v29
    %s325 = scalar_lea.vmem %s0, 8
    %v326 = vld [vmem:[%s325] sm:$0x77]
    %s327 = scalar_lea.vmem %s1, 2
    %v328 = vld [vmem:[%s327] sm:$0x3]
    %s329 = scalar_lea.vmem %s2, 4
    %v330 = vld [vmem:[%s329] sm:$0x7]
    %v332 = vperm.slane %v328, 0
    %v333 = vperm.slane %v328, 1
    %v334 = vrot.slane %v333, 4
    %v335 = vsel %vm37, %v332, %v334
    %v337 = vmul.f32 %v326, %v335
    %339 = vst [vmem:[#allocation1] ss:$2 sm:$0xff] %v337
    %v340 = vld.sshfl [vmem:[#allocation1] sm:$0xff pattern:$0x75316420]
    %v341 = vld.sshfl [vmem:[#allocation1 + $0x8] sm:$0xff pattern:$0x75316420]
    %v346 = vsel %vm49, %v340, %v332
    %v347 = vsel %vm49, %v341, %v333
    %v348 = vsel %vm37, %v346, 0.0
    %v349 = vsel %vm37, %v347, 0.0
    %v350 = vadd.f32 %v348, %v349
    %351 = vadd.xlane.f32.xlu0 %v350
    %v352 = vpop.xlane.xlu0 %351
    %v353 = vmax.f32 %v352, 1e-06
    %v354 = vrcp.pop %v353
    %v355 = vmul.f32 %v353, %v354
    %v356 = vsub.f32 1.0, %v355
    %v357 = vmul.f32 %v354, %v356
    %v358 = vadd.f32 %v354, %v357
    %vm359 = vweird.f32 %v353
    %vm360 = vweird.f32 %v354
    %vm361 = vmor %vm359, %vm360
    %v362 = vsel %vm361, %v354, %v358
    %v363 = vand.u32 2147483647, %v353
    %vm364 = vcmp.eq.f32.partialorder %v363, 8.507059e+37
    %v365 = vand.u32 %v353, 2147483648
    %v366 = vor.u32 1.1754944e-38, %v365
    %v367 = vsel %vm364, %v366, %v362
    %v368 = vmul.f32 1.0, %v367
    %v369 = vperm.slane %v352, 0
    %v370 = vmul.f32 %v21, %v369
    %v371 = vmul.f32 %v22, %v369
    %v372 = vmul.f32 %v23, %v369
    %v373 = vmul.f32 %v24, %v369
    %v374 = vperm.slane %v352, 1
    %v375 = vmul.f32 %v21, %v374
    %v376 = vmul.f32 %v22, %v374
    %v377 = vmul.f32 %v23, %v374
    %v378 = vmul.f32 %v24, %v374
    %383 = vrot.lane.b32.xlu0 %v375, 127
    %v384 = vpop.permute.xlu0 %383
    %385 = vrot.lane.b32.xlu0 %v376, 127
    %v386 = vpop.permute.xlu0 %385
    %387 = vrot.lane.b32.xlu0 %v377, 127
    %v388 = vpop.permute.xlu0 %387
    %389 = vrot.lane.b32.xlu0 %v378, 127
    %v390 = vpop.permute.xlu0 %389
    %v395 = vadd.f32 %v370, %v384
    %v396 = vadd.f32 %v371, %v386
    %v397 = vadd.f32 %v372, %v388
    %v398 = vadd.f32 %v373, %v390
    %v399 = vperm.slane %v352, 2
    %v400 = vmul.f32 %v21, %v399
    %v401 = vmul.f32 %v22, %v399
    %v402 = vmul.f32 %v23, %v399
    %v403 = vmul.f32 %v24, %v399
    %408 = vrot.lane.b32.xlu0 %v400, 126
    %v409 = vpop.permute.xlu0 %408
    %410 = vrot.lane.b32.xlu0 %v401, 126
    %v411 = vpop.permute.xlu0 %410
    %412 = vrot.lane.b32.xlu0 %v402, 126
    %v413 = vpop.permute.xlu0 %412
    %414 = vrot.lane.b32.xlu0 %v403, 126
    %v415 = vpop.permute.xlu0 %414
    %v420 = vadd.f32 %v395, %v409
    %v421 = vadd.f32 %v396, %v411
    %v422 = vadd.f32 %v397, %v413
    %v423 = vadd.f32 %v398, %v415
    %v424 = vperm.slane %v368, 3
    %v425 = vmul.f32 %v420, %v424
    %v426 = vmul.f32 %v421, %v424
    %v427 = vmul.f32 %v422, %v424
    %v428 = vmul.f32 %v423, %v424
    %v429 = vmul.f32 %v352, %v368
    %v430 = vperm.slane %v429, 3
    %v431 = vmul.f32 %v21, %v430
    %v432 = vmul.f32 %v22, %v430
    %v433 = vmul.f32 %v23, %v430
    %v434 = vmul.f32 %v24, %v430
    %439 = vrot.lane.b32.xlu0 %v431, 125
    %v440 = vpop.permute.xlu0 %439
    %441 = vrot.lane.b32.xlu0 %v432, 125
    %v442 = vpop.permute.xlu0 %441
    %443 = vrot.lane.b32.xlu0 %v433, 125
    %v444 = vpop.permute.xlu0 %443
    %445 = vrot.lane.b32.xlu0 %v434, 125
    %v446 = vpop.permute.xlu0 %445
    %v451 = vadd.f32 %v425, %v440
    %v452 = vadd.f32 %v426, %v442
    %v453 = vadd.f32 %v427, %v444
    %v454 = vadd.f32 %v428, %v446
    %v455 = vperm.slane %v330, 0
    %v456 = vmul.f32 %v162, %v455
    %v457 = vmul.f32 %v167, %v455
    %v458 = vmul.f32 %v172, %v455
    %v459 = vmul.f32 %v177, %v455
    %v460 = vperm.slane %v330, 1
    %v461 = vmul.f32 %v186, %v460
    %v462 = vmul.f32 %v190, %v460
    %v463 = vmul.f32 %v194, %v460
    %v464 = vmul.f32 %v198, %v460
    %v465 = vadd.f32 %v456, %v461
    %v466 = vadd.f32 %v457, %v462
    %v467 = vadd.f32 %v458, %v463
    %v468 = vadd.f32 %v459, %v464
    %v469 = vperm.slane %v330, 2
    %v470 = vmul.f32 %v211, %v469
    %v471 = vmul.f32 %v215, %v469
    %v472 = vmul.f32 %v219, %v469
    %v473 = vmul.f32 %v223, %v469
    %v474 = vadd.f32 %v465, %v470
    %v475 = vadd.f32 %v466, %v471
    %v476 = vadd.f32 %v467, %v472
    %v477 = vadd.f32 %v468, %v473
    %v478 = vadd.f32 %v474, %v236
    %v479 = vadd.f32 %v475, %v240
    %v480 = vadd.f32 %v476, %v244
    %v481 = vadd.f32 %v477, %v248
    %482 = vmax.xlane.f32.xlu0 %v478
    %v483 = vpop.xlane.xlu0 %482
    %484 = vmax.xlane.f32.xlu0 %v479
    %v485 = vpop.xlane.xlu0 %484
    %486 = vmax.xlane.f32.xlu0 %v480
    %v487 = vpop.xlane.xlu0 %486
    %488 = vmax.xlane.f32.xlu0 %v481
    %v489 = vpop.xlane.xlu0 %488
    %491 = vset.pattern.permute.xlu0 0
    %492 = vperm.xlu0 %491, %v451
    %v493 = vpop.permute.xlu0 %492
    %496 = vset.pattern.permute.xlu0 0
    %497 = vperm.xlu0 %496, %v452
    %v498 = vpop.permute.xlu0 %497
    %501 = vset.pattern.permute.xlu0 0
    %502 = vperm.xlu0 %501, %v453
    %v503 = vpop.permute.xlu0 %502
    %506 = vset.pattern.permute.xlu0 0
    %507 = vperm.xlu0 %506, %v454
    %v508 = vpop.permute.xlu0 %507
    %v510 = vmul.f32 %v493, %v25
    %v511 = vmul.f32 %v498, %v26
    %v512 = vmul.f32 %v503, %v27
    %v513 = vmul.f32 %v508, %v28
    %v514 = vmul.f32 %v483, %v25
    %v515 = vmul.f32 %v485, %v26
    %v516 = vmul.f32 %v487, %v27
    %v517 = vmul.f32 %v489, %v28
    %522 = vrot.lane.b32.xlu0 %v514, 112
    %v523 = vpop.permute.xlu0 %522
    %524 = vrot.lane.b32.xlu0 %v515, 112
    %v525 = vpop.permute.xlu0 %524
    %526 = vrot.lane.b32.xlu0 %v516, 112
    %v527 = vpop.permute.xlu0 %526
    %528 = vrot.lane.b32.xlu0 %v517, 112
    %v529 = vpop.permute.xlu0 %528
    %v534 = vadd.f32 %v510, %v523
    %v535 = vadd.f32 %v511, %v525
    %v536 = vadd.f32 %v512, %v527
    %v537 = vadd.f32 %v513, %v529
    %v538 = vsel %vm310, %v534, 0.0
    %v539 = vsel %vm310, %v535, 0.0
    %v540 = vadd.f32 %v538, %v539
    %v541 = vsel %vm310, %v536, 0.0
    %v542 = vadd.f32 %v540, %v541
    %v543 = vsel %vm310, %v537, 0.0
    %v544 = vadd.f32 %v542, %v543
    %v545 = vrot.slane %v544, 4
    %v546 = vadd.f32 %v544, %v545
    %v547 = vrot.slane %v546, 2
    %v548 = vadd.f32 %v546, %v547
    %v549 = vrot.slane %v548, 1
    %v550 = vadd.f32 %v548, %v549
    %v551 = vadd.f32 %v550, %v29
    %v553 = vrot.slane %v551, 7
    %vm555 = vcmask 1040384
    %v556 = vsel %vm555, %v324, %v553
    %vm557 = vcmask 123904
    %558 = vst.msk [vmem:[#allocation2] sm:$0x3] %vm557, %v556
    // Predicated region
    $region22: #{tpu_custom_call.1} parent=1 // pred_check
      _
    $region23: #{tpu_custom_call.1} parent=1 // pred_check_branch
      %560 = sbr.rel (0) target = $region25
    $region24: #{tpu_custom_call.1} parent=1 // pred_region
      %562 = vsyncadd [#allocation3], 0
      %s564 = sshll.u32 [#allocation2], 4
      %s565 = int_to_ptr.vmem [resolvable:$true] %s564
      %s566 = sshll.u32 %s5, 4
      %s567 = int_to_ptr.hbm [resolvable:$true] %s566
      %569 = dma.vmem_to_hbm [thread:$0]  %s565, 32, %s567, [#allocation3]
    $region25: #{tpu_custom_call.1} parent=1 // pred_fallthru
      _
    // Predicated region
    $region26: #{tpu_custom_call.1} parent=1 // pred_check
      _
    $region27: #{tpu_custom_call.1} parent=1 // pred_check_branch
      %571 = sbr.rel (0) target = $region29
    $region28: #{tpu_custom_call.1} parent=1 // pred_region
      %573 = dma.done [#allocation3], 32
    $region29: #{tpu_custom_call.1} parent=1 // pred_fallthru
      _
    %574 = vsyncpa [#allocation3], 1

</llo_original>
